<compile_context>
chip_gen: v6e
topology: v6e:2x2x1
jax: 0.10.0
libtpu: 0.0.40
codegen_flags: <defaults>
</compile_context>

<pallas_src>
import functools
import math

import jax
import jax.numpy as jnp
import numpy as np
from jax.experimental import pallas as pl
from jax.experimental.pallas import tpu as pltpu


def _round_up(x, m):
    return (x + m - 1) // m * m


@functools.lru_cache(maxsize=None)
def _vmem_limit():
    """Scoped VMEM limit per generation (conservative on 64-MiB parts)."""
    try:
        cap = pltpu.get_tpu_info().vmem_capacity_bytes
    except Exception:
        cap = 64 * 1024 * 1024
    return 32 * 1024 * 1024 if cap <= 64 * 1024 * 1024 else 64 * 1024 * 1024


def _pick_pool_rows(ho2, wo2, cout, kk, budget_bytes):
    """Largest R (pooled rows / tile) with R | ho2, (2*R*wo2) % 8 == 0 and the
    double-buffered blocks + scratch fitting the VMEM budget."""
    kpad = _round_up(kk, 128)
    cpad = _round_up(cout, 128)
    best = None
    for r in range(1, ho2 + 1):
        if ho2 % r:
            continue
        tile = 2 * r * wo2
        if tile % 8:
            continue
        a_bytes = 2 * 2 * tile * kpad * 2                # 2 operands x 2 buffers, bf16
        macc_bytes = tile * cpad * 4                     # f32 scratch
        out_bytes = 2 * r * _round_up(wo2, 16) * cpad * 2
        if a_bytes + macc_bytes + out_bytes + (2 << 20) <= budget_bytes:
            best = r
    if best is not None:
        return best
    for r in range(1, ho2 + 1):                          # smallest legal fallback
        if ho2 % r == 0 and (2 * r * wo2) % 8 == 0:
            return r
    raise ValueError(f"no legal pool tiling for ho2={ho2}, wo2={wo2}")


# ---------------------------------------------------------------------------
# Fused conv-GEMM + bias + ReLU + 2x2 max-pool kernel.
#   ae_ref / ao_ref : (2*R*Wo2, K) bf16 patch rows for even / odd output cols
#   w_ref           : (K, Cout) bf16
#   b_ref           : (1, Cout) f32
#   o_ref           : (R, Wo2, Cout) pooled output block
#   macc_ref        : (2*R*Wo2, Cout) f32 VMEM scratch
# ---------------------------------------------------------------------------
def _conv_relu_pool_kernel(ae_ref, ao_ref, w_ref, b_ref, o_ref, macc_ref, *,
                           r_pool, wo2):
    acc_e = jnp.dot(ae_ref[...], w_ref[...], preferred_element_type=jnp.float32)
    acc_o = jnp.dot(ao_ref[...], w_ref[...], preferred_element_type=jnp.float32)
    # Horizontal (x) pair-max: even/odd output columns are separate operands.
    macc_ref[...] = jnp.maximum(acc_e, acc_o)
    bias = b_ref[...]                                    # (1, Cout)
    for j in range(r_pool):                              # vertical (y) pair-max
        top = macc_ref[pl.ds((2 * j) * wo2, wo2), :]
        bot = macc_ref[pl.ds((2 * j + 1) * wo2, wo2), :]
        val = jnp.maximum(top, bot) + bias               # bias/ReLU commute with max
        o_ref[j] = jnp.maximum(val, 0.0).astype(o_ref.dtype)


def conv2d_relu_pool(x, wmat, bias, k):
    """x: (N,H,W,Cin); wmat: (k*k*Cin, Cout) in (dy,dx,ci) order; bias: (Cout,)."""
    n, h, w, cin = x.shape
    ho, wo = h - k + 1, w - k + 1
    assert ho % 2 == 0 and wo % 2 == 0, (ho, wo)
    ho2, wo2 = ho // 2, wo // 2
    kk, cout = wmat.shape
    assert kk == k * k * cin, (wmat.shape, k, cin)

    x = x.astype(jnp.bfloat16)
    # Host-side im2col, split by output-column parity (rows ordered
    # (n, conv_row, x_out // 2); K ordered (dy, dx, ci) to match wmat).
    cols_e, cols_o = [], []
    for dy in range(k):
        for dx in range(k):
            band = x[:, dy:dy + ho, :, :]
            cols_e.append(band[:, :, dx:dx + wo:2, :])
            cols_o.append(band[:, :, dx + 1:dx + wo:2, :])
    a_even = jnp.concatenate(cols_e, axis=-1).reshape(n * ho * wo2, kk)
    a_odd = jnp.concatenate(cols_o, axis=-1).reshape(n * ho * wo2, kk)

    limit = _vmem_limit()
    r = _pick_pool_rows(ho2, wo2, cout, kk, limit - 8 * 1024 * 1024)
    tile_rows = 2 * r * wo2
    grid = (n * ho2 // r,)

    out = pl.pallas_call(
        functools.partial(_conv_relu_pool_kernel, r_pool=r, wo2=wo2),
        out_shape=jax.ShapeDtypeStruct((n * ho2, wo2, cout), jnp.bfloat16),
        grid=grid,
        in_specs=[
            pl.BlockSpec((tile_rows, kk), lambda i: (i, 0)),   # even-x patches
            pl.BlockSpec((tile_rows, kk), lambda i: (i, 0)),   # odd-x patches
            pl.BlockSpec((kk, cout), lambda i: (0, 0)),        # weights (resident)
            pl.BlockSpec((1, cout), lambda i: (0, 0)),         # bias
        ],
        out_specs=pl.BlockSpec((r, wo2, cout), lambda i: (i, 0, 0)),
        scratch_shapes=[pltpu.VMEM((tile_rows, cout), jnp.float32)],
        compiler_params=pltpu.CompilerParams(
            dimension_semantics=("parallel",),
            vmem_limit_bytes=limit,
        ),
    )(a_even, a_odd, wmat.astype(jnp.bfloat16),
      bias.reshape(1, cout).astype(jnp.float32))
    return out.reshape(n, ho2, wo2, cout)


# ---------------------------------------------------------------------------
# Fused FC head: fc1 -> relu -> fc2 -> relu -> fc3 -> relu -> out,
# all four matmuls in one kernel, activations kept in VMEM between layers.
# ---------------------------------------------------------------------------
def _fc_head_kernel(x_ref, w1_ref, b1_ref, w2_ref, b2_ref, w3_ref, b3_ref,
                    w4_ref, b4_ref, o_ref):
    h = x_ref[...]
    h = jnp.maximum(
        jnp.dot(h, w1_ref[...], preferred_element_type=jnp.float32)
        + b1_ref[...], 0.0)
    h = jnp.maximum(
        jnp.dot(h.astype(jnp.bfloat16), w2_ref[...],
                preferred_element_type=jnp.float32) + b2_ref[...], 0.0)
    h = jnp.maximum(
        jnp.dot(h.astype(jnp.bfloat16), w3_ref[...],
                preferred_element_type=jnp.float32) + b3_ref[...], 0.0)
    o_ref[...] = (jnp.dot(h.astype(jnp.bfloat16), w4_ref[...],
                          preferred_element_type=jnp.float32)
                  + b4_ref[...]).astype(o_ref.dtype)


def fc_head(x, fc1, fc2, fc3, out_p):
    """x: (M, F); each param is (weight (in,out) bf16, bias (out,) f32)."""
    m = x.shape[0]
    (w1, b1), (w2, b2), (w3, b3), (w4, b4) = fc1, fc2, fc3, out_p
    args = (
        x.astype(jnp.bfloat16),
        w1.astype(jnp.bfloat16), b1.reshape(1, -1).astype(jnp.float32),
        w2.astype(jnp.bfloat16), b2.reshape(1, -1).astype(jnp.float32),
        w3.astype(jnp.bfloat16), b3.reshape(1, -1).astype(jnp.float32),
        w4.astype(jnp.bfloat16), b4.reshape(1, -1).astype(jnp.float32),
    )
    in_specs = [pl.BlockSpec(a.shape, lambda i: (0, 0)) for a in args]
    n_out = w4.shape[1]
    return pl.pallas_call(
        _fc_head_kernel,
        out_shape=jax.ShapeDtypeStruct((m, n_out), jnp.float32),
        grid=(1,),
        in_specs=in_specs,
        out_specs=pl.BlockSpec((m, n_out), lambda i: (0, 0)),
        compiler_params=pltpu.CompilerParams(
            dimension_semantics=("arbitrary",),
            vmem_limit_bytes=_vmem_limit(),
        ),
    )(*args)


# ---------------------------------------------------------------------------
# Parameters (deterministic, PyTorch-default-style uniform init), stored in
# GEMM-ready layout: conv weights as (k*k*Cin, Cout) bf16 in (dy, dx, ci)
# order, FC weights as (in, out) bf16, biases f32.
# ---------------------------------------------------------------------------
def init_params(key):
    def conv_p(k_, cout, cin, ksz):
        k1, k2 = jax.random.split(k_)
        bound = 1.0 / math.sqrt(cin * ksz * ksz)
        w = jax.random.uniform(k1, (cout, cin, ksz, ksz), jnp.float32, -bound, bound)
        b = jax.random.uniform(k2, (cout,), jnp.float32, -bound, bound)
        wmat = jnp.transpose(w, (2, 3, 1, 0)).reshape(ksz * ksz * cin, cout)
        return wmat.astype(jnp.bfloat16), b

    def lin_p(k_, out_f, in_f):
        k1, k2 = jax.random.split(k_)
        bound = 1.0 / math.sqrt(in_f)
        w = jax.random.uniform(k1, (out_f, in_f), jnp.float32, -bound, bound)
        b = jax.random.uniform(k2, (out_f,), jnp.float32, -bound, bound)
        return jnp.transpose(w).astype(jnp.bfloat16), b   # pre-transposed (in, out)

    ks = jax.random.split(key, 8)
    return {
        "conv1": conv_p(ks[0], 10, 3, 5),
        "conv2": conv_p(ks[1], 16, 10, 7),
        "conv3": conv_p(ks[2], 20, 16, 5),
        "conv4": conv_p(ks[3], 40, 20, 7),
        "fc1": lin_p(ks[4], 120, 40 * 26 * 26),
        "fc2": lin_p(ks[5], 84, 120),
        "fc3": lin_p(ks[6], 10, 84),
        "out": lin_p(ks[7], 5, 10),
    }


# ---------------------------------------------------------------------------
# DR_net forward.  fc1 hard-codes 40*26*26 input features, which forces the
# spatial input size to be exactly 3 x 496 x 496.
# ---------------------------------------------------------------------------
def dr_net_forward(params, x_nchw):
    x = jnp.transpose(x_nchw, (0, 2, 3, 1)).astype(jnp.bfloat16)  # NCHW -> NHWC

    x = conv2d_relu_pool(x, *params["conv1"], k=5)   # (N, 246, 246, 10)
    x = conv2d_relu_pool(x, *params["conv2"], k=7)   # (N, 120, 120, 16)
    x = conv2d_relu_pool(x, *params["conv3"], k=5)   # (N,  58,  58, 20)
    x = conv2d_relu_pool(x, *params["conv4"], k=7)   # (N,  26,  26, 40)

    # Flatten in PyTorch (C, H, W) order to match x.view(-1, C*H*W).
    x = jnp.transpose(x, (0, 3, 1, 2)).reshape(x.shape[0], -1)    # (N, 27040)
    return fc_head(x, params["fc1"], params["fc2"], params["fc3"], params["out"])


# ---------------------------------------------------------------------------
# Small self-checks of both Pallas kernels against plain-JAX references.
# ---------------------------------------------------------------------------
def _conv_pool_ref(x, wmat, bias, k):
    n, h, w, cin = x.shape
    ho, wo = h - k + 1, w - k + 1
    cols = [x[:, dy:dy + ho, dx:dx + wo, :] for dy in range(k) for dx in range(k)]
    p = jnp.concatenate(cols, axis=-1).reshape(n * ho * wo, -1)
    y = jnp.maximum(p @ wmat + bias, 0.0)
    y = y.reshape(n, ho // 2, 2, wo // 2, 2, wmat.shape[1])
    return jnp.max(jnp.max(y, axis=4), axis=2)


def _self_check():
    # 1) fused conv + bias + ReLU + 2x2 pool kernel.
    kx, kw, kb = jax.random.split(jax.random.PRNGKey(1), 3)
    n, h, w, cin, cout, k = 1, 11, 11, 3, 6, 4
    x = jax.random.normal(kx, (n, h, w, cin), jnp.float32) * 0.5
    wm = jax.random.normal(kw, (k * k * cin, cout), jnp.float32) * 0.2
    b = jax.random.normal(kb, (cout,), jnp.float32) * 0.2
    got = conv2d_relu_pool(x, wm, b, k)
    ref = _conv_pool_ref(x.astype(jnp.bfloat16).astype(jnp.float32),
                         wm.astype(jnp.bfloat16).astype(jnp.float32), b, k)
    np.testing.assert_allclose(np.asarray(got, np.float32), np.asarray(ref),
                               atol=5e-2, rtol=5e-2)

    # 2) fused FC-head kernel.
    ks = jax.random.split(jax.random.PRNGKey(2), 9)

    def lin(ka, kb_, fi, fo):
        return ((jax.random.normal(ka, (fi, fo), jnp.float32) * 0.2
                 ).astype(jnp.bfloat16),
                jax.random.normal(kb_, (fo,), jnp.float32) * 0.2)

    p1, p2 = lin(ks[0], ks[1], 64, 16), lin(ks[2], ks[3], 16, 8)
    p3, p4 = lin(ks[4], ks[5], 8, 8), lin(ks[6], ks[7], 8, 4)
    xf = jax.random.normal(ks[8], (2, 64), jnp.float32)
    got = fc_head(xf, p1, p2, p3, p4)

    def f32(t):
        return t.astype(jnp.float32)

    hb = f32(xf.astype(jnp.bfloat16))
    hb = jnp.maximum(hb @ f32(p1[0]) + p1[1], 0.0)
    hb = jnp.maximum(f32(hb.astype(jnp.bfloat16)) @ f32(p2[0]) + p2[1], 0.0)
    hb = jnp.maximum(f32(hb.astype(jnp.bfloat16)) @ f32(p3[0]) + p3[1], 0.0)
    ref = f32(hb.astype(jnp.bfloat16)) @ f32(p4[0]) + p4[1]
    np.testing.assert_allclose(np.asarray(got), np.asarray(ref),
                               atol=5e-2, rtol=5e-2)


if __name__ == "__main__":
    _self_check()

    key = jax.random.PRNGKey(0)
    k_in, k_par = jax.random.split(key)

    # Input spatial size 496 is forced by fc1's hard-coded 40*26*26 features.
    x = jax.random.normal(k_in, (2, 3, 496, 496), dtype=jnp.float32)
    params = init_params(k_par)

    fwd = jax.jit(dr_net_forward)
    out = fwd(params, x)
    jax.block_until_ready(out)

    assert out.shape == (2, 5), out.shape
    assert out.dtype == jnp.float32
    assert bool(jnp.all(jnp.isfinite(out)))
    print("KERNEL_OK")
</pallas_src>

<mosaic_0001>
module attributes {stable_mosaic.version = 11 : i64} {
  func.func @_conv_relu_pool_kernel(%arg0: i32, %arg1: memref<32x48xbf16, #tpu.memory_space<vmem>>, %arg2: memref<32x48xbf16, #tpu.memory_space<vmem>>, %arg3: memref<48x6xbf16, #tpu.memory_space<vmem>>, %arg4: memref<1x6xf32, #tpu.memory_space<vmem>>, %arg5: memref<4x4x6xbf16, #tpu.memory_space<vmem>>, %arg6: memref<32x6xf32, #tpu.memory_space<vmem>>) attributes {dimension_semantics = [#tpu.dimension_semantics<parallel>], iteration_bounds = array<i64: 1>, scalar_prefetch = 0 : i64, scratch_operands = 1 : i64, tpu.core_type = #tpu.core_type<tc>, window_params = [{transform_indices = @transform_0, window_bounds = array<i64: 32, 48>}, {transform_indices = @transform_1, window_bounds = array<i64: 32, 48>}, {pipeline_mode = #tpu.pipeline_mode<synchronous>, transform_indices = @transform_2, window_bounds = array<i64: 48, 6>}, {pipeline_mode = #tpu.pipeline_mode<synchronous>, transform_indices = @transform_3, window_bounds = array<i64: 1, 6>}, {transform_indices = @transform_4, window_bounds = array<i64: 4, 4, 6>}]} {
    %c0 = arith.constant 0 : index
    %c0_0 = arith.constant 0 : index
    %0 = vector.load %arg1[%c0, %c0_0] : memref<32x48xbf16, #tpu.memory_space<vmem>>, vector<32x48xbf16>
    %c0_1 = arith.constant 0 : index
    %c0_2 = arith.constant 0 : index
    %1 = vector.load %arg3[%c0_1, %c0_2] : memref<48x6xbf16, #tpu.memory_space<vmem>>, vector<48x6xbf16>
    %cst = arith.constant dense<0.000000e+00> : vector<32x6xf32>
    %2 = tpu.matmul %0, %1, %cst {dimension_numbers = #tpu.dot_dimension_numbers<[1], [0], [0], [1], [0, 0, 1, 1], [], []>} : vector<32x48xbf16>, vector<48x6xbf16>, vector<32x6xf32> -> vector<32x6xf32>
    %c0_3 = arith.constant 0 : index
    %c0_4 = arith.constant 0 : index
    %3 = vector.load %arg2[%c0_3, %c0_4] : memref<32x48xbf16, #tpu.memory_space<vmem>>, vector<32x48xbf16>
    %c0_5 = arith.constant 0 : index
    %c0_6 = arith.constant 0 : index
    %4 = vector.load %arg3[%c0_5, %c0_6] : memref<48x6xbf16, #tpu.memory_space<vmem>>, vector<48x6xbf16>
    %cst_7 = arith.constant dense<0.000000e+00> : vector<32x6xf32>
    %5 = tpu.matmul %3, %4, %cst_7 {dimension_numbers = #tpu.dot_dimension_numbers<[1], [0], [0], [1], [0, 0, 1, 1], [], []>} : vector<32x48xbf16>, vector<48x6xbf16>, vector<32x6xf32> -> vector<32x6xf32>
    %6 = arith.maximumf %2, %5 : vector<32x6xf32>
    %c0_8 = arith.constant 0 : index
    %c0_9 = arith.constant 0 : index
    %7 = vector.load %arg6[%c0_8, %c0_9] : memref<32x6xf32, #tpu.memory_space<vmem>>, vector<32x6xf32>
    tpu.vector_store %arg6[%c0_8, %c0_9], %6 {strides = array<i32>} : memref<32x6xf32, #tpu.memory_space<vmem>>, vector<32x6xf32>,
    %c0_10 = arith.constant 0 : index
    %c0_11 = arith.constant 0 : index
    %8 = vector.load %arg4[%c0_10, %c0_11] : memref<1x6xf32, #tpu.memory_space<vmem>>, vector<1x6xf32>
    %c0_12 = arith.constant 0 : index
    %c0_13 = arith.constant 0 : index
    %9 = vector.load %arg6[%c0_12, %c0_13] : memref<32x6xf32, #tpu.memory_space<vmem>>, vector<4x6xf32>
    %c4 = arith.constant 4 : index
    %c0_14 = arith.constant 0 : index
    %10 = vector.load %arg6[%c4, %c0_14] : memref<32x6xf32, #tpu.memory_space<vmem>>, vector<4x6xf32>
    %11 = arith.maximumf %9, %10 : vector<4x6xf32>
    %12 = vector.broadcast %8 : vector<1x6xf32> to vector<4x6xf32>
    %13 = arith.addf %11, %12 : vector<4x6xf32>
    %cst_15 = arith.constant 0.000000e+00 : f32
    %14 = vector.broadcast %cst_15 : f32 to vector<4x6xf32>
    %15 = arith.maximumf %13, %14 : vector<4x6xf32>
    %16 = arith.truncf %15 : vector<4x6xf32> to vector<4x6xbf16>
    %c0_16 = arith.constant 0 : index
    %c0_17 = arith.constant 0 : index
    %c0_18 = arith.constant 0 : index
    %17 = vector.load %arg5[%c0_16, %c0_17, %c0_18] : memref<4x4x6xbf16, #tpu.memory_space<vmem>>, vector<1x4x6xbf16>
    %18 = vector.shape_cast %17 : vector<1x4x6xbf16> to vector<4x6xbf16>
    %19 = vector.shape_cast %16 : vector<4x6xbf16> to vector<1x4x6xbf16>
    tpu.vector_store %arg5[%c0_16, %c0_17, %c0_18], %19 {strides = array<i32>} : memref<4x4x6xbf16, #tpu.memory_space<vmem>>, vector<1x4x6xbf16>,
    %c8 = arith.constant 8 : index
    %c0_19 = arith.constant 0 : index
    %20 = vector.load %arg6[%c8, %c0_19] : memref<32x6xf32, #tpu.memory_space<vmem>>, vector<4x6xf32>
    %c12 = arith.constant 12 : index
    %c0_20 = arith.constant 0 : index
    %21 = vector.load %arg6[%c12, %c0_20] : memref<32x6xf32, #tpu.memory_space<vmem>>, vector<4x6xf32>
    %22 = arith.maximumf %20, %21 : vector<4x6xf32>
    %23 = vector.broadcast %8 : vector<1x6xf32> to vector<4x6xf32>
    %24 = arith.addf %22, %23 : vector<4x6xf32>
    %cst_21 = arith.constant 0.000000e+00 : f32
    %25 = vector.broadcast %cst_21 : f32 to vector<4x6xf32>
    %26 = arith.maximumf %24, %25 : vector<4x6xf32>
    %27 = arith.truncf %26 : vector<4x6xf32> to vector<4x6xbf16>
    %c1 = arith.constant 1 : index
    %c0_22 = arith.constant 0 : index
    %c0_23 = arith.constant 0 : index
    %28 = vector.load %arg5[%c1, %c0_22, %c0_23] : memref<4x4x6xbf16, #tpu.memory_space<vmem>>, vector<1x4x6xbf16>
    %29 = vector.shape_cast %28 : vector<1x4x6xbf16> to vector<4x6xbf16>
    %30 = vector.shape_cast %27 : vector<4x6xbf16> to vector<1x4x6xbf16>
    tpu.vector_store %arg5[%c1, %c0_22, %c0_23], %30 {strides = array<i32>} : memref<4x4x6xbf16, #tpu.memory_space<vmem>>, vector<1x4x6xbf16>,
    %c16 = arith.constant 16 : index
    %c0_24 = arith.constant 0 : index
    %31 = vector.load %arg6[%c16, %c0_24] : memref<32x6xf32, #tpu.memory_space<vmem>>, vector<4x6xf32>
    %c20 = arith.constant 20 : index
    %c0_25 = arith.constant 0 : index
    %32 = vector.load %arg6[%c20, %c0_25] : memref<32x6xf32, #tpu.memory_space<vmem>>, vector<4x6xf32>
    %33 = arith.maximumf %31, %32 : vector<4x6xf32>
    %34 = vector.broadcast %8 : vector<1x6xf32> to vector<4x6xf32>
    %35 = arith.addf %33, %34 : vector<4x6xf32>
    %cst_26 = arith.constant 0.000000e+00 : f32
    %36 = vector.broadcast %cst_26 : f32 to vector<4x6xf32>
    %37 = arith.maximumf %35, %36 : vector<4x6xf32>
    %38 = arith.truncf %37 : vector<4x6xf32> to vector<4x6xbf16>
    %c2 = arith.constant 2 : index
    %c0_27 = arith.constant 0 : index
    %c0_28 = arith.constant 0 : index
    %39 = vector.load %arg5[%c2, %c0_27, %c0_28] : memref<4x4x6xbf16, #tpu.memory_space<vmem>>, vector<1x4x6xbf16>
    %40 = vector.shape_cast %39 : vector<1x4x6xbf16> to vector<4x6xbf16>
    %41 = vector.shape_cast %38 : vector<4x6xbf16> to vector<1x4x6xbf16>
    tpu.vector_store %arg5[%c2, %c0_27, %c0_28], %41 {strides = array<i32>} : memref<4x4x6xbf16, #tpu.memory_space<vmem>>, vector<1x4x6xbf16>,
    %c24 = arith.constant 24 : index
    %c0_29 = arith.constant 0 : index
    %42 = vector.load %arg6[%c24, %c0_29] : memref<32x6xf32, #tpu.memory_space<vmem>>, vector<4x6xf32>
    %c28 = arith.constant 28 : index
    %c0_30 = arith.constant 0 : index
    %43 = vector.load %arg6[%c28, %c0_30] : memref<32x6xf32, #tpu.memory_space<vmem>>, vector<4x6xf32>
    %44 = arith.maximumf %42, %43 : vector<4x6xf32>
    %45 = vector.broadcast %8 : vector<1x6xf32> to vector<4x6xf32>
    %46 = arith.addf %44, %45 : vector<4x6xf32>
    %cst_31 = arith.constant 0.000000e+00 : f32
    %47 = vector.broadcast %cst_31 : f32 to vector<4x6xf32>
    %48 = arith.maximumf %46, %47 : vector<4x6xf32>
    %49 = arith.truncf %48 : vector<4x6xf32> to vector<4x6xbf16>
    %c3 = arith.constant 3 : index
    %c0_32 = arith.constant 0 : index
    %c0_33 = arith.constant 0 : index
    %50 = vector.load %arg5[%c3, %c0_32, %c0_33] : memref<4x4x6xbf16, #tpu.memory_space<vmem>>, vector<1x4x6xbf16>
    %51 = vector.shape_cast %50 : vector<1x4x6xbf16> to vector<4x6xbf16>
    %52 = vector.shape_cast %49 : vector<4x6xbf16> to vector<1x4x6xbf16>
    tpu.vector_store %arg5[%c3, %c0_32, %c0_33], %52 {strides = array<i32>} : memref<4x4x6xbf16, #tpu.memory_space<vmem>>, vector<1x4x6xbf16>,
    return
  }
  func.func @transform_0(%arg0: i32) -> (i32, i32) {
    %c0_i32 = arith.constant 0 : i32
    %c0_i32_0 = arith.constant 0 : i32
    return %arg0, %c0_i32 : i32, i32
  }
  func.func @transform_1(%arg0: i32) -> (i32, i32) {
    %c0_i32 = arith.constant 0 : i32
    %c0_i32_0 = arith.constant 0 : i32
    return %arg0, %c0_i32 : i32, i32
  }
  func.func @transform_2(%arg0: i32) -> (i32, i32) {
    %c0_i32 = arith.constant 0 : i32
    %c0_i32_0 = arith.constant 0 : i32
    %c0_i32_1 = arith.constant 0 : i32
    return %c0_i32, %c0_i32_0 : i32, i32
  }
  func.func @transform_3(%arg0: i32) -> (i32, i32) {
    %c0_i32 = arith.constant 0 : i32
    %c0_i32_0 = arith.constant 0 : i32
    %c0_i32_1 = arith.constant 0 : i32
    return %c0_i32, %c0_i32_0 : i32, i32
  }
  func.func @transform_4(%arg0: i32) -> (i32, i32, i32) {
    %c0_i32 = arith.constant 0 : i32
    %c0_i32_0 = arith.constant 0 : i32
    %c0_i32_1 = arith.constant 0 : i32
    return %arg0, %c0_i32, %c0_i32_0 : i32, i32, i32
  }
}

</mosaic_0001>

<llo_original>
// kernel: tpu_custom_call.1
$region0: #{tpu_custom_call.1}
  #allocation0 [shape = 'u32[]', space=smem, size = 0x4, offset = 0x4, fixed_abs, tag = 'smem constant byte address 0x4 - core index']
  #allocation1 [shape = 'u32[144,128]{1,0:T(1,128)}', space=vmem, size = 0x12000, scoped, tag = 'internal scratch']
  #allocation2 [shape = 'f32[32,6]{1,0:T(8,128)}', space=vmem, size = 0x4000, scoped, tag = 'scratch operand']
  %s0 = inlined_call_operand.vmem [shape: bf16[32,48], index: 0, kind: input, shape index: {}]
  %s1 = inlined_call_operand.hbm [shape: bf16[32,48], index: 1, kind: input, shape index: {}]
  %s2 = inlined_call_operand.vmem [shape: bf16[48,6], index: 2, kind: input, shape index: {}]
  %s3 = inlined_call_operand.vmem [shape: f32[1,6], index: 3, kind: input, shape index: {}]
  %s4 = inlined_call_operand.hbm [shape: bf16[4,4,6], index: 4, kind: output, shape index: {}]
  %s5 = sld [smem:[#allocation0]]
  $region30: #{tpu_custom_call.1} parent=0
    _
  %s7 = ssub.s32 1, %s5
  %s8 = scalar_select 0, %s7, %s5
  $region1: #{tpu_custom_call.1} parent=0
    #allocation3 [shape = 'u8[8192]{0}', space=vmem, size = 0x2000, scoped, tag = 'input window, operand 1, single buffered']
    #allocation4 [shape = 's32[1]{0}', space=sflag, size = 0x4, scoped, tag = 'scoped memory for tpu_custom_call.1']
    #allocation5 [shape = 's32[1]{0}', space=sflag, size = 0x4, scoped, tag = 'scoped memory for tpu_custom_call.1']
    #allocation6 [shape = 'u8[4096]{0}', space=vmem, size = 0x1000, scoped, tag = 'output window, operand 0, single buffered']
    %9 = vsyncpa [#allocation4], 0
    %10 = vsyncpa [#allocation5], 0
    // Predicated region
    $region2: #{tpu_custom_call.1} parent=1 // pred_check
      _
    $region3: #{tpu_custom_call.1} parent=1 // pred_check_branch
      %12 = sbr.rel (0) target = $region5
    $region4: #{tpu_custom_call.1} parent=1 // pred_region
      _
    $region5: #{tpu_custom_call.1} parent=1 // pred_fallthru
      _
    // Predicated region
    $region6: #{tpu_custom_call.1} parent=1 // pred_check
      _
    $region7: #{tpu_custom_call.1} parent=1 // pred_check_branch
      %14 = sbr.rel (0) target = $region9
    $region8: #{tpu_custom_call.1} parent=1 // pred_region
      %s16 = ssub.s32 256, 256
      %17 = vsyncadd [#allocation4], %s16
      %s18 = sshll.u32 [#allocation3], 4
      %s19 = int_to_ptr.vmem [resolvable:$true] %s18
      %24 = dma.hbm_to_vmem [thread:$0]  %s1, 256, %s19, [#allocation4], 64, 64, 4
    $region9: #{tpu_custom_call.1} parent=1 // pred_fallthru
      _
    // Predicated region
    $region10: #{tpu_custom_call.1} parent=1 // pred_check
      _
    $region11: #{tpu_custom_call.1} parent=1 // pred_check_branch
      %26 = sbr.rel (0) target = $region13
    $region12: #{tpu_custom_call.1} parent=1 // pred_region
      _
    $region13: #{tpu_custom_call.1} parent=1 // pred_fallthru
      _
    // Predicated region
    $region14: #{tpu_custom_call.1} parent=1 // pred_check
      _
    $region15: #{tpu_custom_call.1} parent=1 // pred_check_branch
      %28 = sbr.rel (0) target = $region17
    $region16: #{tpu_custom_call.1} parent=1 // pred_region
      _
    $region17: #{tpu_custom_call.1} parent=1 // pred_fallthru
      _
    // Predicated region
    $region18: #{tpu_custom_call.1} parent=1 // pred_check
      _
    $region19: #{tpu_custom_call.1} parent=1 // pred_check_branch
      %30 = sbr.rel (0) target = $region21
    $region20: #{tpu_custom_call.1} parent=1 // pred_region
      %31 = dma.done [#allocation4], 256
    $region21: #{tpu_custom_call.1} parent=1 // pred_fallthru
      _
    %v33 = vld [vmem:[%s0] sm:$0xf]
    %v34 = vld [vmem:[%s0 + $0x4] sm:$0xf]
    %v35 = vld [vmem:[%s0 + $0x8] sm:$0xf]
    %v36 = vld [vmem:[%s0 + $0xc] sm:$0xf]
    %v37 = vld [vmem:[%s2] sm:$0xf]
    %v38 = vld [vmem:[%s2 + $0x4] sm:$0xf]
    %v39 = vld [vmem:[%s2 + $0x8] sm:$0xf]
    %v40 = vld [vmem:[%s2 + $0xc] sm:$0xf]
    %v41 = vld [vmem:[%s2 + $0x10] sm:$0xf]
    %v42 = vld [vmem:[%s2 + $0x14] sm:$0xf]
    %v47 = vunpack.c.l.b16 %v33
    %v48 = vunpack.c.l.b16 %v34
    %v49 = vunpack.c.l.b16 %v35
    %v50 = vunpack.c.l.b16 %v36
    %v51 = vpack.c.b16 %v48, %v47
    %v52 = vpack.c.b16 %v50, %v49
    %v59 = vunpack.c.l.b16 %v37
    %v60 = vunpack.c.l.b16 %v38
    %v61 = vunpack.c.l.b16 %v39
    %v62 = vunpack.c.l.b16 %v40
    %v63 = vunpack.c.l.b16 %v41
    %v64 = vunpack.c.l.b16 %v42
    %v65 = vpack.c.b16 %v60, %v59
    %v66 = vpack.c.b16 %v62, %v61
    %v67 = vpack.c.b16 %v64, %v63
    %vm71 = vcmask 392192
    %v73 = vsel %vm71, %v51, 0
    %v76 = vsel %vm71, %v52, 0
    %78 = vmatprep.subr.bf16.mxu0 0
    %79 = vmatpush1.bf16.msra.mxu0 0
    %80 = vmatprep.subr.bf16.mxu0 0
    %81 = vmatpush1.bf16.msra.mxu0 0
    %82 = vmatprep.subr.bf16.mxu0 0
    %83 = vmatpush1.bf16.msra.mxu0 0
    %84 = vmatprep.subr.bf16.mxu0 0
    %85 = vmatpush1.bf16.msra.mxu0 0
    %86 = vmatprep.subr.bf16.mxu0 0
    %87 = vmatpush1.bf16.msra.mxu0 0
    %88 = vmatprep.subr.bf16.mxu0 0
    %89 = vmatpush1.bf16.msra.mxu0 %v67
    %90 = vmatprep.subr.bf16.mxu0 0
    %91 = vmatpush1.bf16.msra.mxu0 %v66
    %92 = vmatprep.subr.bf16.mxu0 0
    %93 = vmatpush1.bf16.msra.mxu0 %v65
    %94 = vmatprep.subr.bf16.mxu0 0
    %95 = vmatpush2.bf16.msra.mxu0 0
    %96 = vmatprep.subr.bf16.mxu0 0
    %97 = vmatpush2.bf16.msra.mxu0 0
    %98 = vmatprep.subr.bf16.mxu0 0
    %99 = vmatpush2.bf16.msra.mxu0 0
    %100 = vmatprep.subr.bf16.mxu0 0
    %101 = vmatpush2.bf16.msra.mxu0 0
    %102 = vmatprep.subr.bf16.mxu0 0
    %103 = vmatpush2.bf16.msra.mxu0 0
    %104 = vmatprep.subr.bf16.mxu0 0
    %105 = vmatpush2.bf16.msra.mxu0 0
    %106 = vmatprep.subr.bf16.mxu0 0
    %107 = vmatpush2.bf16.msra.mxu0 0
    %108 = vmatprep.subr.bf16.mxu0 0
    %109 = vmatpush2.bf16.msra.mxu0 0
    %110 = vmatprep.mubr.bf16.mxu0 0
    %111 = vmatmul.mubr.bf16.gmra.mxu0 %v73
    %v112 = vpop.f32.mrf.mxu0
    %v113 = vadd.f32 0.0, %v112
    %v114 = vpop.f32.mrf.mxu0
    %v115 = vpop.f32.mrf.mxu0
    %v116 = vadd.f32 0.0, %v115
    %v117 = vpop.f32.mrf.mxu0
    %118 = vmatprep.mubr.bf16.mxu0 0
    %119 = vmatmul.mubr.bf16.gmra.mxu0 %v76
    %v120 = vpop.f32.mrf.mxu0
    %v121 = vadd.f32 0.0, %v120
    %v122 = vpop.f32.mrf.mxu0
    %v123 = vpop.f32.mrf.mxu0
    %v124 = vadd.f32 0.0, %v123
    %v125 = vpop.f32.mrf.mxu0
    %126 = vdwg.mxu0
    %v127 = vld [vmem:[#allocation3] sm:$0xf]
    %v128 = vld [vmem:[#allocation3 + $0x4] sm:$0xf]
    %v129 = vld [vmem:[#allocation3 + $0x8] sm:$0xf]
    %v130 = vld [vmem:[#allocation3 + $0xc] sm:$0xf]
    %v135 = vunpack.c.l.b16 %v127
    %v136 = vunpack.c.l.b16 %v128
    %v137 = vunpack.c.l.b16 %v129
    %v138 = vunpack.c.l.b16 %v130
    %v139 = vpack.c.b16 %v136, %v135
    %v140 = vpack.c.b16 %v138, %v137
    %v142 = vsel %vm71, %v139, 0
    %v145 = vsel %vm71, %v140, 0
    %147 = vmatprep.subr.bf16.mxu0 0
    %148 = vmatpush1.bf16.msra.mxu0 0
    %149 = vmatprep.subr.bf16.mxu0 0
    %150 = vmatpush1.bf16.msra.mxu0 0
    %151 = vmatprep.subr.bf16.mxu0 0
    %152 = vmatpush1.bf16.msra.mxu0 0
    %153 = vmatprep.subr.bf16.mxu0 0
    %154 = vmatpush1.bf16.msra.mxu0 0
    %155 = vmatprep.subr.bf16.mxu0 0
    %156 = vmatpush1.bf16.msra.mxu0 0
    %157 = vmatprep.subr.bf16.mxu0 0
    %158 = vmatpush1.bf16.msra.mxu0 %v67
    %159 = vmatprep.subr.bf16.mxu0 0
    %160 = vmatpush1.bf16.msra.mxu0 %v66
    %161 = vmatprep.subr.bf16.mxu0 0
    %162 = vmatpush1.bf16.msra.mxu0 %v65
    %163 = vmatprep.subr.bf16.mxu0 0
    %164 = vmatpush2.bf16.msra.mxu0 0
    %165 = vmatprep.subr.bf16.mxu0 0
    %166 = vmatpush2.bf16.msra.mxu0 0
    %167 = vmatprep.subr.bf16.mxu0 0
    %168 = vmatpush2.bf16.msra.mxu0 0
    %169 = vmatprep.subr.bf16.mxu0 0
    %170 = vmatpush2.bf16.msra.mxu0 0
    %171 = vmatprep.subr.bf16.mxu0 0
    %172 = vmatpush2.bf16.msra.mxu0 0
    %173 = vmatprep.subr.bf16.mxu0 0
    %174 = vmatpush2.bf16.msra.mxu0 0
    %175 = vmatprep.subr.bf16.mxu0 0
    %176 = vmatpush2.bf16.msra.mxu0 0
    %177 = vmatprep.subr.bf16.mxu0 0
    %178 = vmatpush2.bf16.msra.mxu0 0
    %179 = vmatprep.mubr.bf16.mxu0 0
    %180 = vmatmul.mubr.bf16.gmra.mxu0 %v142
    %v181 = vpop.f32.mrf.mxu0
    %v182 = vadd.f32 0.0, %v181
    %v183 = vpop.f32.mrf.mxu0
    %v184 = vpop.f32.mrf.mxu0
    %v185 = vadd.f32 0.0, %v184
    %v186 = vpop.f32.mrf.mxu0
    %187 = vmatprep.mubr.bf16.mxu0 0
    %188 = vmatmul.mubr.bf16.gmra.mxu0 %v145
    %v189 = vpop.f32.mrf.mxu0
    %v190 = vadd.f32 0.0, %v189
    %v191 = vpop.f32.mrf.mxu0
    %v192 = vpop.f32.mrf.mxu0
    %v193 = vadd.f32 0.0, %v192
    %v194 = vpop.f32.mrf.mxu0
    %195 = vdwg.mxu0
    %v196 = vmax.f32 %v113, %v182
    %v197 = vmax.f32 %v116, %v185
    %v198 = vmax.f32 %v121, %v190
    %v199 = vmax.f32 %v124, %v193
    %vm200 = vcmask 48128
    %201 = vst.msk [vmem:[#allocation2] sm:$0xff] %vm200, %v196
    %202 = vst.msk [vmem:[#allocation2 + $0x8] sm:$0xff] %vm200, %v197
    %203 = vst.msk [vmem:[#allocation2 + $0x10] sm:$0xff] %vm200, %v198
    %204 = vst.msk [vmem:[#allocation2 + $0x18] sm:$0xff] %vm200, %v199
    %v205 = vld [vmem:[%s3] sm:$0x1]
    %v206 = vld [vmem:[#allocation2] sm:$0xf]
    %v207 = vld [vmem:[#allocation2 + $0x4] sm:$0xf]
    %v208 = vmax.f32 %v206, %v207
    %v210 = vlaneseq
    %v211 = vshrl.u32 %v210, 7
    %v212 = vsub.s32 0, %v211
    %v213 = vrot.slane %v205, %v212
    %v215 = vadd.f32 %v208, %v213
    %v216 = vmax.f32 %v215, 0.0
    %v217 = vpack.c.bf16 %v216, %v216
    %vm218 = vcmask 41984
    %219 = vst.msk [vmem:[#allocation6] sm:$0x3] %vm218, %v217
    %v220 = vld [vmem:[#allocation2 + $0x8] sm:$0xf]
    %v221 = vld [vmem:[#allocation2 + $0xc] sm:$0xf]
    %v222 = vmax.f32 %v220, %v221
    %v223 = vadd.f32 %v222, %v213
    %v224 = vmax.f32 %v223, 0.0
    %v225 = vpack.c.bf16 %v224, %v224
    %s226 = scalar_lea.vmem [#allocation6], 2
    %227 = vst.msk [vmem:[%s226] sm:$0x3] %vm218, %v225
    %v228 = vld [vmem:[#allocation2 + $0x10] sm:$0xf]
    %v229 = vld [vmem:[#allocation2 + $0x14] sm:$0xf]
    %v230 = vmax.f32 %v228, %v229
    %v231 = vadd.f32 %v230, %v213
    %v232 = vmax.f32 %v231, 0.0
    %v233 = vpack.c.bf16 %v232, %v232
    %s234 = scalar_lea.vmem [#allocation6], 4
    %235 = vst.msk [vmem:[%s234] sm:$0x3] %vm218, %v233
    %v236 = vld [vmem:[#allocation2 + $0x18] sm:$0xf]
    %v237 = vld [vmem:[#allocation2 + $0x1c] sm:$0xf]
    %v238 = vmax.f32 %v236, %v237
    %v239 = vadd.f32 %v238, %v213
    %v240 = vmax.f32 %v239, 0.0
    %v241 = vpack.c.bf16 %v240, %v240
    %s242 = scalar_lea.vmem [#allocation6], 6
    %243 = vst.msk [vmem:[%s242] sm:$0x3] %vm218, %v241
    // Predicated region
    $region22: #{tpu_custom_call.1} parent=1 // pred_check
      _
    $region23: #{tpu_custom_call.1} parent=1 // pred_check_branch
      %245 = sbr.rel (0) target = $region25
    $region24: #{tpu_custom_call.1} parent=1 // pred_region
      %s247 = ssub.s32 128, 128
      %248 = vsyncadd [#allocation5], %s247
      %s249 = sshll.u32 [#allocation6], 4
      %s250 = int_to_ptr.vmem [resolvable:$true] %s249
      %255 = dma.vmem_to_hbm [thread:$0]  %s250, 128, %s4, [#allocation5], 32, 32, 2
    $region25: #{tpu_custom_call.1} parent=1 // pred_fallthru
      _
    // Predicated region
    $region26: #{tpu_custom_call.1} parent=1 // pred_check
      _
    $region27: #{tpu_custom_call.1} parent=1 // pred_check_branch
      %257 = sbr.rel (0) target = $region29
    $region28: #{tpu_custom_call.1} parent=1 // pred_region
      %258 = dma.done [#allocation5], 128
    $region29: #{tpu_custom_call.1} parent=1 // pred_fallthru
      _
    %259 = vsyncpa [#allocation4], 1
    %260 = vsyncpa [#allocation5], 1

</llo_original>
